<compile_context>
chip_gen: v7x
topology: tpu7x:2x2x1
jax: 0.10.0
libtpu: 0.0.40
codegen_flags: <defaults>
</compile_context>

<pallas_src>
import jax
import jax.numpy as jnp
from jax.experimental import pallas as pl
from jax.experimental.pallas import tpu as pltpu

_LANES = 128
_SUBLANES = 8
_MAX_BLOCK_ROWS = 1024  # 1024 x 128 f32 = 512 KiB per plane, 1 MiB per block


def _make_hirose_kernel(m_square: float):
    inv_m_sq = 1.0 / float(m_square)

    def kernel(x_ref, o_ref):
        # x_ref: (2, block_rows, 128) f32 — plane 0 = real, plane 1 = imag.
        re = x_ref[0]
        im = x_ref[1]
        sumsq = re * re + im * im
        # Guarded rsqrt: one EUP op, no divides.  At z == 0 -> inv = 0 -> out = 0,
        # matching tanh(0) * exp(1j * angle(0)) == 0.
        inv_mag = jnp.where(sumsq > 0.0, jax.lax.rsqrt(sumsq), 0.0)
        mag = sumsq * inv_mag                      # |z|
        scale = jnp.tanh(mag * inv_m_sq) * inv_mag  # tanh(|z|/m^2) / |z|
        o_ref[0] = re * scale
        o_ref[1] = im * scale

    return kernel


def hirose(x, m_square: float = 1.0):
    """Pallas implementation of Hirose.forward: tanh(|z|/m^2) * exp(1j*angle(z))."""
    orig_shape = x.shape
    n = x.size

    # Lane-dense slab geometry: (2, rows_padded, 128) f32.
    rows = max((n + _LANES - 1) // _LANES, 1)
    rows8 = ((rows + _SUBLANES - 1) // _SUBLANES) * _SUBLANES
    block_rows = min(_MAX_BLOCK_ROWS, rows8)          # tiny input -> single block
    rows_padded = ((rows8 + block_rows - 1) // block_rows) * block_rows
    total = rows_padded * _LANES
    pad = total - n

    # Split + pad + stack: one fused XLA pass producing the single kernel input.
    re = jnp.real(x).astype(jnp.float32).reshape(-1)
    im = jnp.imag(x).astype(jnp.float32).reshape(-1)
    stacked = jnp.stack(
        [jnp.pad(re, (0, pad)), jnp.pad(im, (0, pad))]
    ).reshape(2, rows_padded, _LANES)

    grid = (rows_padded // block_rows,)
    spec = pl.BlockSpec((2, block_rows, _LANES), lambda i: (0, i, 0))

    n_padded = rows_padded * _LANES
    out = pl.pallas_call(
        _make_hirose_kernel(m_square),
        out_shape=jax.ShapeDtypeStruct((2, rows_padded, _LANES), jnp.float32),
        grid=grid,
        in_specs=[spec],
        out_specs=spec,
        compiler_params=pltpu.CompilerParams(
            dimension_semantics=("parallel",),
        ),
        cost_estimate=pl.CostEstimate(
            flops=10 * n_padded,            # muls/adds/selects per complex element
            transcendentals=2 * n_padded,   # rsqrt + tanh per complex element
            bytes_accessed=2 * 2 * n_padded * 4,  # 1 in + 1 out, 2 planes, f32
        ),
    )(stacked)

    # Single recombine pass back to complex64.
    out_re = out[0].reshape(-1)[:n]
    out_im = out[1].reshape(-1)[:n]
    return jax.lax.complex(out_re, out_im).reshape(orig_shape).astype(jnp.complex64)


def _reference(x, m_square: float):
    """Pure-JAX reference mirroring cF.hirose."""
    mag = jnp.abs(x)
    return (jnp.tanh(mag / m_square) * jnp.exp(1j * jnp.angle(x))).astype(jnp.complex64)


if __name__ == "__main__":
    key = jax.random.PRNGKey(0)
    k_re, k_im = jax.random.split(key)

    # NCHW complex feature map, as the module would see from a complex conv.
    shape = (2, 4, 16, 16)
    x = (jax.random.normal(k_re, shape, dtype=jnp.float32)
         + 1j * jax.random.normal(k_im, shape, dtype=jnp.float32)).astype(jnp.complex64)

    m_square = 1.0
    y = jax.block_until_ready(hirose(x, m_square))
    r = _reference(x, m_square)
    assert jnp.allclose(jnp.real(y), jnp.real(r), atol=1e-5)
    assert jnp.allclose(jnp.imag(y), jnp.imag(r), atol=1e-5)

    # Ragged shape (exercises the padding path) with a non-unit m^2.
    k2a, k2b = jax.random.split(jax.random.PRNGKey(1))
    shape2 = (3, 5, 7)
    x2 = (jax.random.normal(k2a, shape2, dtype=jnp.float32)
          + 1j * jax.random.normal(k2b, shape2, dtype=jnp.float32)).astype(jnp.complex64)
    y2 = jax.block_until_ready(hirose(x2, 2.5))
    r2 = _reference(x2, 2.5)
    assert jnp.allclose(jnp.real(y2), jnp.real(r2), atol=1e-5)
    assert jnp.allclose(jnp.imag(y2), jnp.imag(r2), atol=1e-5)

    print("KERNEL_OK")
</pallas_src>

<mosaic_0001>
module attributes {stable_mosaic.version = 11 : i64} {
  func.func @kernel(%arg0: i32, %arg1: memref<2x16x128xf32, #tpu.memory_space<vmem>>, %arg2: memref<2x16x128xf32, #tpu.memory_space<vmem>>) attributes {dimension_semantics = [#tpu.dimension_semantics<parallel>], iteration_bounds = array<i64: 1>, scalar_prefetch = 0 : i64, scratch_operands = 0 : i64, tpu.core_type = #tpu.core_type<tc>, window_params = [{transform_indices = @transform_0, window_bounds = array<i64: 2, 16, 128>}, {transform_indices = @transform_1, window_bounds = array<i64: 2, 16, 128>}]} {
    %c0 = arith.constant 0 : index
    %c0_0 = arith.constant 0 : index
    %c0_1 = arith.constant 0 : index
    %0 = vector.load %arg1[%c0, %c0_0, %c0_1] : memref<2x16x128xf32, #tpu.memory_space<vmem>>, vector<1x16x128xf32>
    %1 = vector.shape_cast %0 : vector<1x16x128xf32> to vector<16x128xf32>
    %c1 = arith.constant 1 : index
    %c0_2 = arith.constant 0 : index
    %c0_3 = arith.constant 0 : index
    %2 = vector.load %arg1[%c1, %c0_2, %c0_3] : memref<2x16x128xf32, #tpu.memory_space<vmem>>, vector<1x16x128xf32>
    %3 = vector.shape_cast %2 : vector<1x16x128xf32> to vector<16x128xf32>
    %4 = arith.mulf %1, %1 : vector<16x128xf32>
    %5 = arith.mulf %3, %3 : vector<16x128xf32>
    %6 = arith.addf %4, %5 : vector<16x128xf32>
    %cst = arith.constant 0.000000e+00 : f32
    %7 = vector.broadcast %cst : f32 to vector<16x128xf32>
    %8 = arith.cmpf ogt, %6, %7 : vector<16x128xf32>
    %9 = math.rsqrt %6 : vector<16x128xf32>
    %cst_4 = arith.constant 0.000000e+00 : f32
    %10 = vector.broadcast %cst_4 : f32 to vector<16x128xf32>
    %11 = arith.select %8, %9, %10 : vector<16x128xi1>, vector<16x128xf32>
    %12 = arith.mulf %6, %11 : vector<16x128xf32>
    %cst_5 = arith.constant 1.000000e+00 : f32
    %13 = vector.broadcast %cst_5 : f32 to vector<16x128xf32>
    %14 = arith.mulf %12, %13 : vector<16x128xf32>
    %15 = math.tanh %14 : vector<16x128xf32>
    %16 = arith.mulf %15, %11 : vector<16x128xf32>
    %17 = arith.mulf %1, %16 : vector<16x128xf32>
    %c0_6 = arith.constant 0 : index
    %c0_7 = arith.constant 0 : index
    %c0_8 = arith.constant 0 : index
    %18 = vector.load %arg2[%c0_6, %c0_7, %c0_8] : memref<2x16x128xf32, #tpu.memory_space<vmem>>, vector<1x16x128xf32>
    %19 = vector.shape_cast %18 : vector<1x16x128xf32> to vector<16x128xf32>
    %20 = vector.shape_cast %17 : vector<16x128xf32> to vector<1x16x128xf32>
    tpu.vector_store %arg2[%c0_6, %c0_7, %c0_8], %20 {strides = array<i32>} : memref<2x16x128xf32, #tpu.memory_space<vmem>>, vector<1x16x128xf32>,
    %21 = arith.mulf %3, %16 : vector<16x128xf32>
    %c1_9 = arith.constant 1 : index
    %c0_10 = arith.constant 0 : index
    %c0_11 = arith.constant 0 : index
    %22 = vector.load %arg2[%c1_9, %c0_10, %c0_11] : memref<2x16x128xf32, #tpu.memory_space<vmem>>, vector<1x16x128xf32>
    %23 = vector.shape_cast %22 : vector<1x16x128xf32> to vector<16x128xf32>
    %24 = vector.shape_cast %21 : vector<16x128xf32> to vector<1x16x128xf32>
    tpu.vector_store %arg2[%c1_9, %c0_10, %c0_11], %24 {strides = array<i32>} : memref<2x16x128xf32, #tpu.memory_space<vmem>>, vector<1x16x128xf32>,
    return
  }
  func.func @transform_0(%arg0: i32) -> (i32, i32, i32) {
    %c0_i32 = arith.constant 0 : i32
    %c0_i32_0 = arith.constant 0 : i32
    %c0_i32_1 = arith.constant 0 : i32
    return %c0_i32, %arg0, %c0_i32_0 : i32, i32, i32
  }
  func.func @transform_1(%arg0: i32) -> (i32, i32, i32) {
    %c0_i32 = arith.constant 0 : i32
    %c0_i32_0 = arith.constant 0 : i32
    %c0_i32_1 = arith.constant 0 : i32
    return %c0_i32, %arg0, %c0_i32_0 : i32, i32, i32
  }
}

</mosaic_0001>

<llo_original>
// kernel: tpu_custom_call.1
$region0: #{tpu_custom_call.1}
  #allocation0 [shape = 'u32[]', space=smem, size = 0x4, offset = 0x4, fixed_abs, tag = 'smem constant byte address 0x4 - core index']
  #allocation1 [shape = 'u32[144,128]{1,0:T(1,128)}', space=vmem, size = 0x12000, scoped, tag = 'internal scratch']
  %s0 = inlined_call_operand.hbm [shape: f32[2,16,128], index: 0, kind: input, shape index: {}]
  %s1 = inlined_call_operand.hbm [shape: f32[2,16,128], index: 1, kind: output, shape index: {}]
  %s2 = sld [smem:[#allocation0]]
  $region18: #{tpu_custom_call.1} parent=0
    _
  %s4 = ssub.s32 1, %s2
  %s5 = scalar_select 0, %s4, %s2
  $region1: #{tpu_custom_call.1} parent=0
    #allocation2 [shape = 'u8[16384]{0}', space=vmem, size = 0x4000, scoped, tag = 'input window, operand 0, single buffered']
    #allocation3 [shape = 's32[1]{0}', space=sflag, size = 0x4, scoped, tag = 'scoped memory for tpu_custom_call.1']
    #allocation4 [shape = 's32[1]{0}', space=sflag, size = 0x4, scoped, tag = 'scoped memory for tpu_custom_call.1']
    #allocation5 [shape = 'u8[16384]{0}', space=vmem, size = 0x4000, scoped, tag = 'output window, operand 0, single buffered']
    %6 = vsyncpa [#allocation3], 0
    %7 = vsyncpa [#allocation4], 0
    // Predicated region
    $region2: #{tpu_custom_call.1} parent=1 // pred_check
      _
    $region3: #{tpu_custom_call.1} parent=1 // pred_check_branch
      %9 = sbr.rel (0) target = $region5
    $region4: #{tpu_custom_call.1} parent=1 // pred_region
      %s11 = ssub.s32 512, 512
      %12 = vsyncadd [#allocation3], %s11
      %s13 = sshll.u32 [#allocation2], 4
      %s14 = int_to_ptr.vmem [resolvable:$true] %s13
      %19 = dma.hbm_to_vmem [thread:$0]  %s0, 512, %s14, [#allocation3], 128, 128, 8
    $region5: #{tpu_custom_call.1} parent=1 // pred_fallthru
      _
    // Predicated region
    $region6: #{tpu_custom_call.1} parent=1 // pred_check
      _
    $region7: #{tpu_custom_call.1} parent=1 // pred_check_branch
      %21 = sbr.rel (0) target = $region9
    $region8: #{tpu_custom_call.1} parent=1 // pred_region
      %22 = dma.done [#allocation3], 512
    $region9: #{tpu_custom_call.1} parent=1 // pred_fallthru
      _
    %v23 = vld [vmem:[#allocation2] sm:$0xff]
    %v24 = vld [vmem:[#allocation2 + $0x8] sm:$0xff]
    %s25 = scalar_lea.vmem [#allocation2], 16
    %v26 = vld [vmem:[%s25] sm:$0xff]
    %v27 = vld [vmem:[%s25 + $0x8] sm:$0xff]
    %v28 = vmul.f32 %v23, %v23
    %v29 = vmul.f32 %v24, %v24
    %v30 = vmul.f32 %v26, %v26
    %v31 = vmul.f32 %v27, %v27
    %v32 = vadd.f32 %v28, %v30
    %v33 = vadd.f32 %v29, %v31
    %vm34 = vcmp.gt.f32.partialorder %v32, 0.0
    %vm35 = vcmp.gt.f32.partialorder %v33, 0.0
    %v36 = vrsqrt.pop %v32
    %v37 = vrsqrt.pop %v33
    %v38 = vsel %vm34, %v36, 0.0
    %v39 = vsel %vm35, %v37, 0.0
    %v40 = vmul.f32 %v32, %v38
    %v41 = vmul.f32 %v33, %v39
    %v42 = vtanh.pop %v40
    %v43 = vtanh.pop %v41
    %v44 = vmul.f32 %v42, %v38
    %v45 = vmul.f32 %v43, %v39
    %v46 = vmul.f32 %v23, %v44
    %v47 = vmul.f32 %v24, %v45
    %48 = vst [vmem:[#allocation5] sm:$0xff] %v46
    %49 = vst [vmem:[#allocation5 + $0x8] sm:$0xff] %v47
    %v50 = vmul.f32 %v26, %v44
    %v51 = vmul.f32 %v27, %v45
    %s52 = scalar_lea.vmem [#allocation5], 16
    %53 = vst [vmem:[%s52] sm:$0xff] %v50
    %54 = vst [vmem:[%s52 + $0x8] sm:$0xff] %v51
    // Predicated region
    $region10: #{tpu_custom_call.1} parent=1 // pred_check
      _
    $region11: #{tpu_custom_call.1} parent=1 // pred_check_branch
      %56 = sbr.rel (0) target = $region13
    $region12: #{tpu_custom_call.1} parent=1 // pred_region
      %s58 = ssub.s32 512, 512
      %59 = vsyncadd [#allocation4], %s58
      %s60 = sshll.u32 [#allocation5], 4
      %s61 = int_to_ptr.vmem [resolvable:$true] %s60
      %66 = dma.vmem_to_hbm [thread:$0]  %s61, 512, %s1, [#allocation4], 128, 128, 8
    $region13: #{tpu_custom_call.1} parent=1 // pred_fallthru
      _
    // Predicated region
    $region14: #{tpu_custom_call.1} parent=1 // pred_check
      _
    $region15: #{tpu_custom_call.1} parent=1 // pred_check_branch
      %68 = sbr.rel (0) target = $region17
    $region16: #{tpu_custom_call.1} parent=1 // pred_region
      %69 = dma.done [#allocation4], 512
    $region17: #{tpu_custom_call.1} parent=1 // pred_fallthru
      _
    %70 = vsyncpa [#allocation3], 1
    %71 = vsyncpa [#allocation4], 1

</llo_original>
